<compile_context>
chip_gen: v7x
topology: tpu7x:2x2x1
jax: 0.10.0
libtpu: 0.0.40
codegen_flags: <defaults>
</compile_context>

<pallas_src>
import functools

import jax
import jax.numpy as jnp
from jax import lax
from jax.experimental import pallas as pl
from jax.experimental.pallas import tpu as pltpu


def _round_up(x, m):
    return ((x + m - 1) // m) * m


def _vmem_estimate(bt, ct, D, mm_bytes):
    """Rough double-buffered VMEM working-set estimate (bytes)."""
    lane = 128
    w_tile = 2 * D * ct * mm_bytes          # streamed weight tile (double buf)
    h_tile = 2 * bt * D * mm_bytes          # hidden tile (resident over j)
    rows = 2 * 2 * 8 * ct * 4               # inv_wn + bias (1, ct) f32, padded
    cols = 2 * 2 * bt * lane * 4            # labels + out (bt, 1), lane-padded
    scratch = 4 * bt * lane * 4             # 4 accumulators (bt, 1) f32
    return w_tile + h_tile + rows + cols + scratch


def _amsoftmax_kernel(h_ref, w_ref, invwn_ref, bias_ref, lab_ref, out_ref,
                      shn_sc, m_sc, l_sc, t_sc,
                      *, scale, margin, c_tile, has_pad):
    j = pl.program_id(1)
    eps = jnp.float32(1e-12)

    # --- per-B-tile init on the first C step --------------------------------
    @pl.when(j == 0)
    def _init():
        h32 = h_ref[...].astype(jnp.float32)
        hssq = jnp.sum(h32 * h32, axis=1, keepdims=True)           # (bt, 1)
        # scale / max(||h||, eps), scale folded in once (EUP rsqrt)
        shn_sc[...] = jnp.float32(scale) * lax.rsqrt(jnp.maximum(hssq, eps * eps))
        m_sc[...] = jnp.full(m_sc.shape, -1e30, dtype=jnp.float32)
        l_sc[...] = jnp.zeros(l_sc.shape, dtype=jnp.float32)
        t_sc[...] = jnp.zeros(t_sc.shape, dtype=jnp.float32)

    # --- MXU matmul on raw mm_dtype tiles, rescale the small result tile ----
    acc = jnp.dot(h_ref[...], w_ref[...], preferred_element_type=jnp.float32)
    # scale * cos(theta): row factor scale/||h||, col factor 1/||w|| (precomp.)
    logits = acc * shn_sc[...] * invwn_ref[...]                     # (bt, ct)

    bt, ct = logits.shape
    rel = lab_ref[...] - j * c_tile                                 # (bt, 1) i32
    onehot_f = (lax.broadcasted_iota(jnp.int32, (bt, ct), 1) == rel
                ).astype(jnp.float32)                               # (bt, ct)
    logits = logits - jnp.float32(scale * margin) * onehot_f
    if has_pad:
        # prestreamed 0 / -1e30 row kills padded (non-existent) classes
        logits = logits + bias_ref[...]

    # --- online logsumexp update ---------------------------------------------
    m_prev = m_sc[...]
    m_new = jnp.maximum(m_prev, jnp.max(logits, axis=1, keepdims=True))
    alpha = jnp.exp(m_prev - m_new)
    p = jnp.exp(logits - m_new)
    l_sc[...] = alpha * l_sc[...] + jnp.sum(p, axis=1, keepdims=True)
    m_sc[...] = m_new
    # only the C-tile owning the label contributes a nonzero target logit
    t_sc[...] = t_sc[...] + jnp.sum(onehot_f * logits, axis=1, keepdims=True)

    # --- finalize: per-sample CE loss on the last C step ----------------------
    @pl.when(j == pl.num_programs(1) - 1)
    def _fin():
        out_ref[...] = m_sc[...] + jnp.log(l_sc[...]) - t_sc[...]


def am_softmax_loss(hidden_states, weight, labels, *, scale=30.0, margin=0.4,
                    bt=512, ct=512, mm_dtype=jnp.bfloat16,
                    vmem_budget_bytes=40 << 20):
    """hidden_states: (B, D), weight: (D, C), labels: any shape with B elems."""
    B, D = hidden_states.shape
    D2, C = weight.shape
    assert D == D2
    mm_bytes = jnp.dtype(mm_dtype).itemsize

    # ---- tile sizing ---------------------------------------------------------
    B_pad8 = _round_up(B, 8)
    bt = _round_up(max(8, min(int(bt), B_pad8)), 8)
    if B_pad8 >= 16:
        # v7x megacore: keep >= 2 B tiles so both TensorCores get work.
        bt = min(bt, _round_up(-(-B_pad8 // 2), 8))
    # ct: 128-aligned (512 default is already 256-aligned for v6e/v7x MXUs).
    ct = _round_up(max(128, min(int(ct), _round_up(C, 128))), 128)

    # keep the double-buffered working set under the v7x-safe VMEM budget
    while _vmem_estimate(bt, ct, D, mm_bytes) > vmem_budget_bytes and ct > 128:
        ct = max(128, _round_up(ct // 2, 128))
    while _vmem_estimate(bt, ct, D, mm_bytes) > vmem_budget_bytes and bt > 8:
        bt = max(8, _round_up(bt // 2, 8))

    B_pad = _round_up(B, bt)
    C_pad = _round_up(C, ct)
    has_pad = (C_pad != C)

    # ---- operand prep (one-time, wrapper-side) -------------------------------
    h = hidden_states.astype(mm_dtype)
    w = weight.astype(mm_dtype)
    labels2d = labels.reshape(-1).astype(jnp.int32).reshape(B, 1)
    if B_pad != B:
        h = jnp.pad(h, ((0, B_pad - B), (0, 0)))
        labels2d = jnp.pad(labels2d, ((0, B_pad - B), (0, 0)))
    if C_pad != C:
        w = jnp.pad(w, ((0, 0), (0, C_pad - C)))

    # column norms from the SAME mm_dtype values the MXU consumes
    w32 = w.astype(jnp.float32)
    wssq = jnp.sum(w32 * w32, axis=0, keepdims=True)                # (1, C_pad)
    inv_wn = lax.rsqrt(jnp.maximum(wssq, jnp.float32(1e-24)))
    valid = (jnp.arange(C_pad)[None, :] < C)
    inv_wn = jnp.where(valid, inv_wn, 0.0).astype(jnp.float32)
    bias = jnp.where(valid, 0.0, -1e30).astype(jnp.float32)         # (1, C_pad)

    grid = (B_pad // bt, C_pad // ct)

    kernel = functools.partial(
        _amsoftmax_kernel,
        scale=float(scale), margin=float(margin),
        c_tile=int(ct), has_pad=bool(has_pad),
    )

    est = _vmem_estimate(bt, ct, D, mm_bytes)
    vmem_limit = int(min(48 << 20, max(est + (2 << 20), 24 << 20)))

    per_sample = pl.pallas_call(
        kernel,
        out_shape=jax.ShapeDtypeStruct((B_pad, 1), jnp.float32),
        grid=grid,
        in_specs=[
            pl.BlockSpec((bt, D), lambda i, j: (i, 0)),   # hidden tile (resident over j)
            pl.BlockSpec((D, ct), lambda i, j: (0, j)),   # weight tile stream (mm_dtype)
            pl.BlockSpec((1, ct), lambda i, j: (0, j)),   # precomputed 1/||w_c||
            pl.BlockSpec((1, ct), lambda i, j: (0, j)),   # 0 / -1e30 padding bias row
            pl.BlockSpec((bt, 1), lambda i, j: (i, 0)),   # labels for this B-tile
        ],
        out_specs=pl.BlockSpec((bt, 1), lambda i, j: (i, 0)),
        scratch_shapes=[
            pltpu.VMEM((bt, 1), jnp.float32),   # scale / ||h|| per row
            pltpu.VMEM((bt, 1), jnp.float32),   # running max m
            pltpu.VMEM((bt, 1), jnp.float32),   # running sum l
            pltpu.VMEM((bt, 1), jnp.float32),   # running target logit
        ],
        compiler_params=pltpu.CompilerParams(
            dimension_semantics=("parallel", "arbitrary"),
            vmem_limit_bytes=vmem_limit,
        ),
    )(h, w, inv_wn, bias, labels2d)

    # mean CE over the real (unpadded) batch; trivial, done off the kernel path
    return jnp.mean(per_sample[:B, 0])


if __name__ == "__main__":
    key = jax.random.PRNGKey(0)
    k_w, k_h, k_l = jax.random.split(key, 3)

    # Small shapes chosen to exercise padding + multi-tile grid:
    #   B=12 -> B_pad=16 (2 B-tiles of 8), C=200 -> padded C tiles on both paths
    B, D, C = 12, 64, 200
    scale, margin = 30.0, 0.4

    weight = jax.random.normal(k_w, (D, C), dtype=jnp.float32)
    hidden_states = jax.random.normal(k_h, (B, D), dtype=jnp.float32)
    labels = jax.random.randint(k_l, (B,), 0, C, dtype=jnp.int32)

    # Pure-JAX f32 reference (matches the PyTorch module semantics).
    hn = hidden_states / jnp.maximum(
        jnp.linalg.norm(hidden_states, axis=1, keepdims=True), 1e-12)
    wn = weight / jnp.maximum(
        jnp.linalg.norm(weight, axis=0, keepdims=True), 1e-12)
    cos = hn @ wn
    onehot = jax.nn.one_hot(labels, C, dtype=jnp.bool_)
    logits = scale * jnp.where(onehot, cos - margin, cos)
    ref = jnp.mean(
        jax.nn.logsumexp(logits, axis=1)
        - jnp.take_along_axis(logits, labels[:, None], axis=1)[:, 0])

    # f32 MXU path, explicit small tiles -> grid (2, 2): exercises multi-C-tile
    # accumulation + padded last C tile (tight check against the reference).
    loss_f32 = am_softmax_loss(hidden_states, weight, labels,
                               scale=scale, margin=margin,
                               bt=8, ct=128, mm_dtype=jnp.float32)
    jax.block_until_ready(loss_f32)
    assert jnp.allclose(loss_f32, ref, atol=1e-2, rtol=1e-2), (loss_f32, ref)

    # bf16-in / f32-accumulate MXU path with default (auto-sized) tiles —
    # the fast configuration on v5e/v6e/v7x.
    loss_bf16 = am_softmax_loss(hidden_states, weight, labels,
                                scale=scale, margin=margin,
                                mm_dtype=jnp.bfloat16)
    jax.block_until_ready(loss_bf16)
    assert jnp.allclose(loss_bf16, ref, atol=2.5e-1, rtol=5e-2), (loss_bf16, ref)

    print("KERNEL_OK")
</pallas_src>

<mosaic_0001>
module attributes {stable_mosaic.version = 11 : i64} {
  func.func @_amsoftmax_kernel(%arg0: i32, %arg1: i32, %arg2: memref<8x64xf32, #tpu.memory_space<vmem>>, %arg3: memref<64x128xf32, #tpu.memory_space<vmem>>, %arg4: memref<1x128xf32, #tpu.memory_space<vmem>>, %arg5: memref<1x128xf32, #tpu.memory_space<vmem>>, %arg6: memref<8x1xi32, #tpu.memory_space<vmem>>, %arg7: memref<8x1xf32, #tpu.memory_space<vmem>>, %arg8: memref<8x1xf32, #tpu.memory_space<vmem>>, %arg9: memref<8x1xf32, #tpu.memory_space<vmem>>, %arg10: memref<8x1xf32, #tpu.memory_space<vmem>>, %arg11: memref<8x1xf32, #tpu.memory_space<vmem>>) attributes {dimension_semantics = [#tpu.dimension_semantics<parallel>, #tpu.dimension_semantics<arbitrary>], iteration_bounds = array<i64: 2, 2>, scalar_prefetch = 0 : i64, scratch_operands = 4 : i64, tpu.core_type = #tpu.core_type<tc>, window_params = [{transform_indices = @transform_0, window_bounds = array<i64: 8, 64>}, {transform_indices = @transform_1, window_bounds = array<i64: 64, 128>}, {transform_indices = @transform_2, window_bounds = array<i64: 1, 128>}, {transform_indices = @transform_3, window_bounds = array<i64: 1, 128>}, {transform_indices = @transform_4, window_bounds = array<i64: 8, 1>}, {transform_indices = @transform_5, window_bounds = array<i64: 8, 1>}]} {
    %c0_i32 = arith.constant 0 : i32
    %0 = arith.cmpi eq, %arg1, %c0_i32 : i32
    %1 = arith.extui %0 : i1 to i32
    %cst = arith.constant 9.99999996E-13 : f32
    %c0_i32_0 = arith.constant 0 : i32
    %2 = arith.cmpi ne, %1, %c0_i32_0 : i32
    scf.if %2 {
      %c0_30 = arith.constant 0 : index
      %c0_31 = arith.constant 0 : index
      %52 = vector.load %arg2[%c0_30, %c0_31] : memref<8x64xf32, #tpu.memory_space<vmem>>, vector<8x64xf32>
      %53 = arith.mulf %52, %52 : vector<8x64xf32>
      %cst_32 = arith.constant dense<0.000000e+00> : vector<8xf32>
      %54 = vector.multi_reduction <add>, %53, %cst_32 [1] : vector<8x64xf32> to vector<8xf32>
      %55 = vector.shape_cast %54 : vector<8xf32> to vector<8x1xf32>
      %56 = arith.mulf %cst, %cst : f32
      %57 = vector.broadcast %56 : f32 to vector<8x1xf32>
      %58 = arith.maximumf %55, %57 : vector<8x1xf32>
      %59 = math.rsqrt %58 : vector<8x1xf32>
      %cst_33 = arith.constant 3.000000e+01 : f32
      %60 = vector.broadcast %cst_33 : f32 to vector<8x1xf32>
      %61 = arith.mulf %60, %59 : vector<8x1xf32>
      %c0_34 = arith.constant 0 : index
      %c0_35 = arith.constant 0 : index
      %62 = vector.load %arg8[%c0_34, %c0_35] : memref<8x1xf32, #tpu.memory_space<vmem>>, vector<8x1xf32>
      tpu.vector_store %arg8[%c0_34, %c0_35], %61 {strides = array<i32>} : memref<8x1xf32, #tpu.memory_space<vmem>>, vector<8x1xf32>,
      %cst_36 = arith.constant -1.000000e+30 : f32
      %63 = vector.broadcast %cst_36 : f32 to vector<8x1xf32>
      %c0_37 = arith.constant 0 : index
      %c0_38 = arith.constant 0 : index
      %64 = vector.load %arg9[%c0_37, %c0_38] : memref<8x1xf32, #tpu.memory_space<vmem>>, vector<8x1xf32>
      tpu.vector_store %arg9[%c0_37, %c0_38], %63 {strides = array<i32>} : memref<8x1xf32, #tpu.memory_space<vmem>>, vector<8x1xf32>,
      %cst_39 = arith.constant 0.000000e+00 : f32
      %65 = vector.broadcast %cst_39 : f32 to vector<8x1xf32>
      %c0_40 = arith.constant 0 : index
      %c0_41 = arith.constant 0 : index
      %66 = vector.load %arg10[%c0_40, %c0_41] : memref<8x1xf32, #tpu.memory_space<vmem>>, vector<8x1xf32>
      tpu.vector_store %arg10[%c0_40, %c0_41], %65 {strides = array<i32>} : memref<8x1xf32, #tpu.memory_space<vmem>>, vector<8x1xf32>,
      %cst_42 = arith.constant 0.000000e+00 : f32
      %67 = vector.broadcast %cst_42 : f32 to vector<8x1xf32>
      %c0_43 = arith.constant 0 : index
      %c0_44 = arith.constant 0 : index
      %68 = vector.load %arg11[%c0_43, %c0_44] : memref<8x1xf32, #tpu.memory_space<vmem>>, vector<8x1xf32>
      tpu.vector_store %arg11[%c0_43, %c0_44], %67 {strides = array<i32>} : memref<8x1xf32, #tpu.memory_space<vmem>>, vector<8x1xf32>,
    } else {
    }
    %c0 = arith.constant 0 : index
    %c0_1 = arith.constant 0 : index
    %3 = vector.load %arg2[%c0, %c0_1] : memref<8x64xf32, #tpu.memory_space<vmem>>, vector<8x64xf32>
    %c0_2 = arith.constant 0 : index
    %c0_3 = arith.constant 0 : index
    %4 = vector.load %arg3[%c0_2, %c0_3] : memref<64x128xf32, #tpu.memory_space<vmem>>, vector<64x128xf32>
    %cst_4 = arith.constant dense<0.000000e+00> : vector<8x128xf32>
    %5 = tpu.matmul %3, %4, %cst_4 {dimension_numbers = #tpu.dot_dimension_numbers<[1], [0], [0], [1], [0, 0, 1, 1], [], []>} : vector<8x64xf32>, vector<64x128xf32>, vector<8x128xf32> -> vector<8x128xf32>
    %c0_5 = arith.constant 0 : index
    %c0_6 = arith.constant 0 : index
    %6 = vector.load %arg8[%c0_5, %c0_6] : memref<8x1xf32, #tpu.memory_space<vmem>>, vector<8x1xf32>
    %7 = vector.broadcast %6 : vector<8x1xf32> to vector<8x128xf32>
    %8 = arith.mulf %5, %7 : vector<8x128xf32>
    %c0_7 = arith.constant 0 : index
    %c0_8 = arith.constant 0 : index
    %9 = vector.load %arg4[%c0_7, %c0_8] : memref<1x128xf32, #tpu.memory_space<vmem>>, vector<1x128xf32>
    %10 = vector.broadcast %9 : vector<1x128xf32> to vector<8x128xf32>
    %11 = arith.mulf %8, %10 : vector<8x128xf32>
    %c0_9 = arith.constant 0 : index
    %c0_10 = arith.constant 0 : index
    %12 = vector.load %arg6[%c0_9, %c0_10] : memref<8x1xi32, #tpu.memory_space<vmem>>, vector<8x1xi32>
    %c128_i32 = arith.constant 128 : i32
    %13 = arith.muli %arg1, %c128_i32 : i32
    %14 = vector.broadcast %13 : i32 to vector<8x1xi32>
    %15 = arith.subi %12, %14 : vector<8x1xi32>
    %16 = tpu.iota {dimensions = array<i32: 1>} : vector<8x128xi32>
    %17 = vector.broadcast %15 : vector<8x1xi32> to vector<8x128xi32>
    %18 = arith.cmpi eq, %16, %17 : vector<8x128xi32>
    %19 = arith.extui %18 : vector<8x128xi1> to vector<8x128xi32>
    %20 = arith.sitofp %19 : vector<8x128xi32> to vector<8x128xf32>
    %cst_11 = arith.constant 1.200000e+01 : f32
    %21 = vector.broadcast %cst_11 : f32 to vector<8x128xf32>
    %22 = arith.mulf %21, %20 : vector<8x128xf32>
    %23 = arith.subf %11, %22 : vector<8x128xf32>
    %c0_12 = arith.constant 0 : index
    %c0_13 = arith.constant 0 : index
    %24 = vector.load %arg5[%c0_12, %c0_13] : memref<1x128xf32, #tpu.memory_space<vmem>>, vector<1x128xf32>
    %25 = vector.broadcast %24 : vector<1x128xf32> to vector<8x128xf32>
    %26 = arith.addf %23, %25 : vector<8x128xf32>
    %c0_14 = arith.constant 0 : index
    %c0_15 = arith.constant 0 : index
    %27 = vector.load %arg9[%c0_14, %c0_15] : memref<8x1xf32, #tpu.memory_space<vmem>>, vector<8x1xf32>
    %cst_16 = arith.constant dense<0xFF800000> : vector<8xf32>
    %28 = vector.multi_reduction <maximumf>, %26, %cst_16 [1] : vector<8x128xf32> to vector<8xf32>
    %29 = vector.shape_cast %28 : vector<8xf32> to vector<8x1xf32>
    %30 = arith.maximumf %27, %29 : vector<8x1xf32>
    %31 = arith.subf %27, %30 : vector<8x1xf32>
    %32 = math.exp %31 : vector<8x1xf32>
    %33 = vector.broadcast %30 : vector<8x1xf32> to vector<8x128xf32>
    %34 = arith.subf %26, %33 : vector<8x128xf32>
    %35 = math.exp %34 : vector<8x128xf32>
    %c0_17 = arith.constant 0 : index
    %c0_18 = arith.constant 0 : index
    %36 = vector.load %arg10[%c0_17, %c0_18] : memref<8x1xf32, #tpu.memory_space<vmem>>, vector<8x1xf32>
    %37 = arith.mulf %32, %36 : vector<8x1xf32>
    %cst_19 = arith.constant dense<0.000000e+00> : vector<8xf32>
    %38 = vector.multi_reduction <add>, %35, %cst_19 [1] : vector<8x128xf32> to vector<8xf32>
    %39 = vector.shape_cast %38 : vector<8xf32> to vector<8x1xf32>
    %40 = arith.addf %37, %39 : vector<8x1xf32>
    %c0_20 = arith.constant 0 : index
    %c0_21 = arith.constant 0 : index
    %41 = vector.load %arg10[%c0_20, %c0_21] : memref<8x1xf32, #tpu.memory_space<vmem>>, vector<8x1xf32>
    tpu.vector_store %arg10[%c0_20, %c0_21], %40 {strides = array<i32>} : memref<8x1xf32, #tpu.memory_space<vmem>>, vector<8x1xf32>,
    %c0_22 = arith.constant 0 : index
    %c0_23 = arith.constant 0 : index
    %42 = vector.load %arg9[%c0_22, %c0_23] : memref<8x1xf32, #tpu.memory_space<vmem>>, vector<8x1xf32>
    tpu.vector_store %arg9[%c0_22, %c0_23], %30 {strides = array<i32>} : memref<8x1xf32, #tpu.memory_space<vmem>>, vector<8x1xf32>,
    %c0_24 = arith.constant 0 : index
    %c0_25 = arith.constant 0 : index
    %43 = vector.load %arg11[%c0_24, %c0_25] : memref<8x1xf32, #tpu.memory_space<vmem>>, vector<8x1xf32>
    %44 = arith.mulf %20, %26 : vector<8x128xf32>
    %cst_26 = arith.constant dense<0.000000e+00> : vector<8xf32>
    %45 = vector.multi_reduction <add>, %44, %cst_26 [1] : vector<8x128xf32> to vector<8xf32>
    %46 = vector.shape_cast %45 : vector<8xf32> to vector<8x1xf32>
    %47 = arith.addf %43, %46 : vector<8x1xf32>
    %c0_27 = arith.constant 0 : index
    %c0_28 = arith.constant 0 : index
    %48 = vector.load %arg11[%c0_27, %c0_28] : memref<8x1xf32, #tpu.memory_space<vmem>>, vector<8x1xf32>
    tpu.vector_store %arg11[%c0_27, %c0_28], %47 {strides = array<i32>} : memref<8x1xf32, #tpu.memory_space<vmem>>, vector<8x1xf32>,
    %c1_i32 = arith.constant 1 : i32
    %49 = arith.cmpi eq, %arg1, %c1_i32 : i32
    %50 = arith.extui %49 : i1 to i32
    %c0_i32_29 = arith.constant 0 : i32
    %51 = arith.cmpi ne, %50, %c0_i32_29 : i32
    scf.if %51 {
      %c0_30 = arith.constant 0 : index
      %c0_31 = arith.constant 0 : index
      %52 = vector.load %arg9[%c0_30, %c0_31] : memref<8x1xf32, #tpu.memory_space<vmem>>, vector<8x1xf32>
      %c0_32 = arith.constant 0 : index
      %c0_33 = arith.constant 0 : index
      %53 = vector.load %arg10[%c0_32, %c0_33] : memref<8x1xf32, #tpu.memory_space<vmem>>, vector<8x1xf32>
      %54 = math.log %53 : vector<8x1xf32>
      %55 = arith.addf %52, %54 : vector<8x1xf32>
      %c0_34 = arith.constant 0 : index
      %c0_35 = arith.constant 0 : index
      %56 = vector.load %arg11[%c0_34, %c0_35] : memref<8x1xf32, #tpu.memory_space<vmem>>, vector<8x1xf32>
      %57 = arith.subf %55, %56 : vector<8x1xf32>
      %c0_36 = arith.constant 0 : index
      %c0_37 = arith.constant 0 : index
      %58 = vector.load %arg7[%c0_36, %c0_37] : memref<8x1xf32, #tpu.memory_space<vmem>>, vector<8x1xf32>
      tpu.vector_store %arg7[%c0_36, %c0_37], %57 {strides = array<i32>} : memref<8x1xf32, #tpu.memory_space<vmem>>, vector<8x1xf32>,
    } else {
    }
    return
  }
  func.func @transform_0(%arg0: i32, %arg1: i32) -> (i32, i32) {
    %c0_i32 = arith.constant 0 : i32
    %c0_i32_0 = arith.constant 0 : i32
    return %arg0, %c0_i32 : i32, i32
  }
  func.func @transform_1(%arg0: i32, %arg1: i32) -> (i32, i32) {
    %c0_i32 = arith.constant 0 : i32
    %c0_i32_0 = arith.constant 0 : i32
    return %c0_i32, %arg1 : i32, i32
  }
  func.func @transform_2(%arg0: i32, %arg1: i32) -> (i32, i32) {
    %c0_i32 = arith.constant 0 : i32
    %c0_i32_0 = arith.constant 0 : i32
    return %c0_i32, %arg1 : i32, i32
  }
  func.func @transform_3(%arg0: i32, %arg1: i32) -> (i32, i32) {
    %c0_i32 = arith.constant 0 : i32
    %c0_i32_0 = arith.constant 0 : i32
    return %c0_i32, %arg1 : i32, i32
  }
  func.func @transform_4(%arg0: i32, %arg1: i32) -> (i32, i32) {
    %c0_i32 = arith.constant 0 : i32
    %c0_i32_0 = arith.constant 0 : i32
    return %arg0, %c0_i32 : i32, i32
  }
  func.func @transform_5(%arg0: i32, %arg1: i32) -> (i32, i32) {
    %c0_i32 = arith.constant 0 : i32
    %c0_i32_0 = arith.constant 0 : i32
    return %arg0, %c0_i32 : i32, i32
  }
}

</mosaic_0001>

<llo_original>
// kernel: tpu_custom_call.1
$region0: #{tpu_custom_call.1}
  #allocation0 [shape = 'u32[]', space=smem, size = 0x4, offset = 0x4, fixed_abs, tag = 'smem constant byte address 0x4 - core index']
  #allocation1 [shape = 'u32[144,128]{1,0:T(1,128)}', space=vmem, size = 0x12000, scoped, tag = 'internal scratch']
  #allocation2 [shape = 'f32[8,1]{1,0:T(8,128)}', space=vmem, size = 0x1000, scoped, tag = 'scratch operand']
  #allocation3 [shape = 'f32[8,1]{1,0:T(8,128)}', space=vmem, size = 0x1000, scoped, tag = 'scratch operand']
  #allocation4 [shape = 'f32[8,1]{1,0:T(8,128)}', space=vmem, size = 0x1000, scoped, tag = 'scratch operand']
  #allocation5 [shape = 'f32[8,1]{1,0:T(8,128)}', space=vmem, size = 0x1000, scoped, tag = 'scratch operand']
  %s0 = inlined_call_operand.vmem [shape: f32[16,64], index: 0, kind: input, shape index: {}]
  %s1 = inlined_call_operand.hbm [shape: f32[64,256], index: 1, kind: input, shape index: {}]
  %s2 = inlined_call_operand.vmem [shape: f32[1,256], index: 2, kind: input, shape index: {}]
  %s3 = inlined_call_operand.vmem [shape: f32[1,256], index: 3, kind: input, shape index: {}]
  %s4 = inlined_call_operand.vmem [shape: s32[16,1], index: 4, kind: input, shape index: {}]
  %s5 = inlined_call_operand.vmem [shape: f32[16,1], index: 5, kind: output, shape index: {}]
  %s6 = sld [smem:[#allocation0]]
  $region65: #{tpu_custom_call.1} parent=0
    _
  %s8 = ssub.s32 1, %s6
  %s9 = scalar_select 0, %s8, %s6
  $region1: #{tpu_custom_call.1} parent=0
    #allocation6 [shape = 'u8[65536]{0}', space=vmem, size = 0x10000, scoped, tag = 'input window, operand 1']
    #allocation7 [shape = 's32[2]{0}', space=sflag, size = 0x8, scoped, tag = 'scoped memory for tpu_custom_call.1']
    %10 = vsyncpa [#allocation7], 0
    %s11 = scalar_lea.sflag [#allocation7], 1
    %12 = vsyncpa %s11, 0
    loop: start=0, step=1, limit=6
    $region2: #{tpu_custom_call.1} parent=1 // loop_pre_header
      _
    $region3: #{tpu_custom_call.1} parent=1 // loop_header
      %s14 = sphi 0, %s18
      %p15 = scmp.ge.s32.totalorder %s14, 6
      %s21 = sphi 0, %s33
      %s22 = sphi 0, %s29
      %s23 = sphi 0, %s21
      %s24 = sphi 0, %s22
      %s25 = sphi 0, %s23
      %s26 = sphi 0, %s24
      %s36 = sphi 0, %s38
      %s39 = sphi 0, %s36
      %s40 = sphi 0, %s39
      %s56 = sphi 0, %s40
      %s62 = sphi 0, %s64
      %s65 = sphi 0, %s62
      %s66 = sphi 0, %s65
      %s82 = sphi 0, %s66
      %s88 = sphi 0, %s90
      %s91 = sphi 0, %s88
      %s92 = sphi 0, %s91
      %s108 = sphi 0, %s92
      %s114 = sphi 0, %s116
      %s117 = sphi 0, %s114
      %s118 = sphi 0, %s117
      %s134 = sphi 0, %s118
      %s140 = sphi 0, %s142
      %s143 = sphi 0, %s140
      %s144 = sphi 0, %s143
      %s160 = sphi 0, %s144
      %s166 = sphi 0, %s168
      %s169 = sphi 0, %s166
      %s170 = sphi 0, %s169
      %s186 = sphi 0, %s170
    $region4: #{tpu_custom_call.1} parent=1 // loop_header_branch
      %17 = sbr.rel (%p15) target = $region8
    $region5: #{tpu_custom_call.1} parent=1 // loop_body
      %s19 = ssub.s32 %s14, 1
      %s20 = ssub.s32 %s14, 2
      %s27 = sadd.s32 1, %s22
      %p28 = scmp.ge.s32.totalorder %s27, 2
      %s29 = scalar_select %p28, 0, %s27
      %s30 = sadd.s32 1, %s21
      %s31 = scalar_select %p28, %s30, %s21
      %p32 = scmp.ge.s32.totalorder %s31, 2
      %s33 = scalar_select %p32, 0, %s31
      %s34 = ssub.s32 %s21, %s33
      %p35 = scmp.eq.s32.totalorder %s34, 0
      %s37 = sadd.s32 %s36, 1
      %s38 = scalar_select %p35, %s36, %s37
      %p41 = pneg %p35
      %p42 = scmp.eq.s32.totalorder %s14, 3
      %p43 = por %p41, %p42
      %p44 = scmp.ne.s32.totalorder %s36, %s39
      %p45 = scmp.eq.s32.totalorder %s14, 0
      %p46 = por %p44, %p45
      %p47 = scmp.ne.s32.totalorder %s36, %s39
      %p48 = scmp.eq.s32.totalorder %s19, 3
      %p49 = por %p47, %p48
      %p50 = scmp.ne.s32.totalorder %s39, %s40
      %p51 = scmp.eq.s32.totalorder %s19, 0
      %p52 = por %p50, %p51
      %p53 = scmp.ne.s32.totalorder %s39, %s40
      %p54 = scmp.eq.s32.totalorder %s20, 3
      %p55 = por %p53, %p54
      %p57 = scmp.ne.s32.totalorder %s40, %s56
      %p58 = scmp.eq.s32.totalorder %s20, 0
      %p59 = por %p57, %p58
      %s60 = ssub.s32 %s22, %s29
      %p61 = scmp.eq.s32.totalorder %s60, 0
      %s63 = sadd.s32 %s62, 1
      %s64 = scalar_select %p61, %s62, %s63
      %p67 = pneg %p61
      %p68 = scmp.eq.s32.totalorder %s14, 3
      %p69 = por %p67, %p68
      %p70 = scmp.ne.s32.totalorder %s62, %s65
      %p71 = scmp.eq.s32.totalorder %s14, 0
      %p72 = por %p70, %p71
      %p73 = scmp.ne.s32.totalorder %s62, %s65
      %p74 = scmp.eq.s32.totalorder %s19, 3
      %p75 = por %p73, %p74
      %p76 = scmp.ne.s32.totalorder %s65, %s66
      %p77 = scmp.eq.s32.totalorder %s19, 0
      %p78 = por %p76, %p77
      %p79 = scmp.ne.s32.totalorder %s65, %s66
      %p80 = scmp.eq.s32.totalorder %s20, 3
      %p81 = por %p79, %p80
      %p83 = scmp.ne.s32.totalorder %s66, %s82
      %p84 = scmp.eq.s32.totalorder %s20, 0
      %p85 = por %p83, %p84
      %s86 = ssub.s32 %s22, %s29
      %p87 = scmp.eq.s32.totalorder %s86, 0
      %s89 = sadd.s32 %s88, 1
      %s90 = scalar_select %p87, %s88, %s89
      %p93 = pneg %p87
      %p94 = scmp.eq.s32.totalorder %s14, 3
      %p95 = por %p93, %p94
      %p96 = scmp.ne.s32.totalorder %s88, %s91
      %p97 = scmp.eq.s32.totalorder %s14, 0
      %p98 = por %p96, %p97
      %p99 = scmp.ne.s32.totalorder %s88, %s91
      %p100 = scmp.eq.s32.totalorder %s19, 3
      %p101 = por %p99, %p100
      %p102 = scmp.ne.s32.totalorder %s91, %s92
      %p103 = scmp.eq.s32.totalorder %s19, 0
      %p104 = por %p102, %p103
      %p105 = scmp.ne.s32.totalorder %s91, %s92
      %p106 = scmp.eq.s32.totalorder %s20, 3
      %p107 = por %p105, %p106
      %p109 = scmp.ne.s32.totalorder %s92, %s108
      %p110 = scmp.eq.s32.totalorder %s20, 0
      %p111 = por %p109, %p110
      %s112 = ssub.s32 %s22, %s29
      %p113 = scmp.eq.s32.totalorder %s112, 0
      %s115 = sadd.s32 %s114, 1
      %s116 = scalar_select %p113, %s114, %s115
      %p119 = pneg %p113
      %p120 = scmp.eq.s32.totalorder %s14, 3
      %p121 = por %p119, %p120
      %p122 = scmp.ne.s32.totalorder %s114, %s117
      %p123 = scmp.eq.s32.totalorder %s14, 0
      %p124 = por %p122, %p123
      %p125 = scmp.ne.s32.totalorder %s114, %s117
      %p126 = scmp.eq.s32.totalorder %s19, 3
      %p127 = por %p125, %p126
      %p128 = scmp.ne.s32.totalorder %s117, %s118
      %p129 = scmp.eq.s32.totalorder %s19, 0
      %p130 = por %p128, %p129
      %p131 = scmp.ne.s32.totalorder %s117, %s118
      %p132 = scmp.eq.s32.totalorder %s20, 3
      %p133 = por %p131, %p132
      %p135 = scmp.ne.s32.totalorder %s118, %s134
      %p136 = scmp.eq.s32.totalorder %s20, 0
      %p137 = por %p135, %p136
      %s138 = ssub.s32 %s21, %s33
      %p139 = scmp.eq.s32.totalorder %s138, 0
      %s141 = sadd.s32 %s140, 1
      %s142 = scalar_select %p139, %s140, %s141
      %p145 = pneg %p139
      %p146 = scmp.eq.s32.totalorder %s14, 3
      %p147 = por %p145, %p146
      %p148 = scmp.ne.s32.totalorder %s140, %s143
      %p149 = scmp.eq.s32.totalorder %s14, 0
      %p150 = por %p148, %p149
      %p151 = scmp.ne.s32.totalorder %s140, %s143
      %p152 = scmp.eq.s32.totalorder %s19, 3
      %p153 = por %p151, %p152
      %p154 = scmp.ne.s32.totalorder %s143, %s144
      %p155 = scmp.eq.s32.totalorder %s19, 0
      %p156 = por %p154, %p155
      %p157 = scmp.ne.s32.totalorder %s143, %s144
      %p158 = scmp.eq.s32.totalorder %s20, 3
      %p159 = por %p157, %p158
      %p161 = scmp.ne.s32.totalorder %s144, %s160
      %p162 = scmp.eq.s32.totalorder %s20, 0
      %p163 = por %p161, %p162
      %s164 = ssub.s32 %s21, %s33
      %p165 = scmp.eq.s32.totalorder %s164, 0
      %s167 = sadd.s32 %s166, 1
      %s168 = scalar_select %p165, %s166, %s167
      %p171 = pneg %p165
      %p172 = scmp.eq.s32.totalorder %s14, 3
      %p173 = por %p171, %p172
      %p174 = scmp.ne.s32.totalorder %s166, %s169
      %p175 = scmp.eq.s32.totalorder %s14, 0
      %p176 = por %p174, %p175
      %p177 = scmp.ne.s32.totalorder %s166, %s169
      %p178 = scmp.eq.s32.totalorder %s19, 3
      %p179 = por %p177, %p178
      %p180 = scmp.ne.s32.totalorder %s169, %s170
      %p181 = scmp.eq.s32.totalorder %s19, 0
      %p182 = por %p180, %p181
      %p183 = scmp.ne.s32.totalorder %s169, %s170
      %p184 = scmp.eq.s32.totalorder %s20, 3
      %p185 = por %p183, %p184
      %p187 = scmp.ne.s32.totalorder %s170, %s186
      %p188 = scmp.eq.s32.totalorder %s20, 0
      %p189 = por %p187, %p188
      %p190 = scmp.le.s32.totalorder 1, %s14
      %p191 = scmp.lt.s32.totalorder %s14, 5
      %p192 = pnand %p190, %p191
      %p193 = pneg %p192
      // Predicated region
      $region9: #{tpu_custom_call.1} parent=5 // pred_check
        _
      $region10: #{tpu_custom_call.1} parent=5 // pred_check_branch
        %195 = sbr.rel (%p192) target = $region12
      $region11: #{tpu_custom_call.1} parent=5 // pred_region
        %s196 = ssub.s32 %s14, 1
      $region12: #{tpu_custom_call.1} parent=5 // pred_fallthru
        _
      %p197 = scmp.lt.s32.totalorder %s14, 4
      // Predicated region
      $region13: #{tpu_custom_call.1} parent=5 // pred_check
        %p198 = pneg %p197
      $region14: #{tpu_custom_call.1} parent=5 // pred_check_branch
        %200 = sbr.rel (%p198) target = $region16
      $region15: #{tpu_custom_call.1} parent=5 // pred_region
        // Predicated region
        $region17: #{tpu_custom_call.1} parent=15 // pred_check
          %p201 = pneg %p46
        $region18: #{tpu_custom_call.1} parent=15 // pred_check_branch
          %203 = sbr.rel (%p201) target = $region20
        $region19: #{tpu_custom_call.1} parent=15 // pred_region
          %p204 = scmp.lt.s32.totalorder %s21, 1
          %s205 = scalar_select %p204, %s21, 1
          %s206 = smul.addr %s205, 8
          %s207 = scalar_lea.vmem %s0, %s206
        $region20: #{tpu_custom_call.1} parent=15 // pred_fallthru
          _
        // Predicated region
        $region21: #{tpu_custom_call.1} parent=15 // pred_check
          %p208 = pneg %p72
        $region22: #{tpu_custom_call.1} parent=15 // pred_check_branch
          %210 = sbr.rel (%p208) target = $region24
        $region23: #{tpu_custom_call.1} parent=15 // pred_region
          %s211 = sand.u32 %s62, 1
          %s212 = scalar_lea.sflag [#allocation7], %s211
          %s213 = sand.u32 %s62, 1
          %s214 = smul.addr %s213, 64
          %s215 = scalar_lea.vmem [#allocation6], %s214
          %s217 = ssub.s32 1024, 1024
          %218 = vsyncadd %s212, %s217
          %s219 = smul.addr %s22, 128
          %s220 = scalar_lea.hbm %s1, %s219
          %s221 = sshll.u32 %s215, 4
          %s222 = int_to_ptr.vmem [resolvable:$true] %s221
          %227 = dma.hbm_to_vmem [thread:$0]  %s220, 1024, %s222, %s212, 256, 128, 8
        $region24: #{tpu_custom_call.1} parent=15 // pred_fallthru
          _
        // Predicated region
        $region25: #{tpu_custom_call.1} parent=15 // pred_check
          %p228 = pneg %p98
        $region26: #{tpu_custom_call.1} parent=15 // pred_check_branch
          %230 = sbr.rel (%p228) target = $region28
        $region27: #{tpu_custom_call.1} parent=15 // pred_region
          %p231 = scmp.lt.s32.totalorder %s22, 1
          %s232 = scalar_select %p231, %s22, 1
          %s233 = scalar_lea.vmem %s2, %s232
        $region28: #{tpu_custom_call.1} parent=15 // pred_fallthru
          _
        // Predicated region
        $region29: #{tpu_custom_call.1} parent=15 // pred_check
          %p234 = pneg %p124
        $region30: #{tpu_custom_call.1} parent=15 // pred_check_branch
          %236 = sbr.rel (%p234) target = $region32
        $region31: #{tpu_custom_call.1} parent=15 // pred_region
          %p237 = scmp.lt.s32.totalorder %s22, 1
          %s238 = scalar_select %p237, %s22, 1
          %s239 = scalar_lea.vmem %s3, %s238
        $region32: #{tpu_custom_call.1} parent=15 // pred_fallthru
          _
        // Predicated region
        $region33: #{tpu_custom_call.1} parent=15 // pred_check
          %p240 = pneg %p150
        $region34: #{tpu_custom_call.1} parent=15 // pred_check_branch
          %242 = sbr.rel (%p240) target = $region36
        $region35: #{tpu_custom_call.1} parent=15 // pred_region
          %p243 = scmp.lt.s32.totalorder %s21, 1
          %s244 = scalar_select %p243, %s21, 1
          %s245 = smul.addr %s244, 8
          %s246 = scalar_lea.vmem %s4, %s245
        $region36: #{tpu_custom_call.1} parent=15 // pred_fallthru
          _
      $region16: #{tpu_custom_call.1} parent=5 // pred_fallthru
        _
      %p247 = scmp.le.s32.totalorder 1, %s14
      %p248 = scmp.lt.s32.totalorder %s14, 5
      %p249 = pnand %p247, %p248
      %p250 = pneg %p249
      // Predicated region
      $region37: #{tpu_custom_call.1} parent=5 // pred_check
        _
      $region38: #{tpu_custom_call.1} parent=5 // pred_check_branch
        %252 = sbr.rel (%p249) target = $region40
      $region39: #{tpu_custom_call.1} parent=5 // pred_region
        %s253 = ssub.s32 %s14, 1
        %s254 = sand.u32 %s65, 1
        %s255 = scalar_lea.sflag [#allocation7], %s254
        %s256 = sand.u32 %s65, 1
        %s257 = smul.addr %s256, 64
        %s258 = scalar_lea.vmem [#allocation6], %s257
        // Predicated region
        $region41: #{tpu_custom_call.1} parent=39 // pred_check
          %p259 = pneg %p78
        $region42: #{tpu_custom_call.1} parent=39 // pred_check_branch
          %261 = sbr.rel (%p259) target = $region44
        $region43: #{tpu_custom_call.1} parent=39 // pred_region
          %262 = dma.done %s255, 1024
        $region44: #{tpu_custom_call.1} parent=39 // pred_fallthru
          _
        %p263 = scmp.lt.s32.totalorder %s23, 1
        %s264 = scalar_select %p263, %s23, 1
        %s265 = smul.addr %s264, 8
        %s266 = scalar_lea.vmem %s0, %s265
        %p267 = pneg %p52
        %p268 = pneg %p49
        %s269 = sand.u32 %s65, 1
        %s270 = scalar_lea.sflag [#allocation7], %s269
        %s271 = sand.u32 %s65, 1
        %s272 = smul.addr %s271, 64
        %s273 = scalar_lea.vmem [#allocation6], %s272
        %p274 = pneg %p78
        %p275 = pneg %p75
        %p276 = scmp.lt.s32.totalorder %s24, 1
        %s277 = scalar_select %p276, %s24, 1
        %s278 = scalar_lea.vmem %s2, %s277
        %p279 = pneg %p104
        %p280 = pneg %p101
        %p281 = scmp.lt.s32.totalorder %s24, 1
        %s282 = scalar_select %p281, %s24, 1
        %s283 = scalar_lea.vmem %s3, %s282
        %p284 = pneg %p130
        %p285 = pneg %p127
        %p286 = scmp.lt.s32.totalorder %s23, 1
        %s287 = scalar_select %p286, %s23, 1
        %s288 = smul.addr %s287, 8
        %s289 = scalar_lea.vmem %s4, %s288
        %p290 = pneg %p156
        %p291 = pneg %p153
        %p292 = pneg %p182
        %p293 = pneg %p179
        %p294 = scmp.lt.s32.totalorder %s23, 1
        %s295 = scalar_select %p294, %s23, 1
        %s296 = smul.addr %s295, 8
        %s297 = scalar_lea.vmem %s5, %s296
        %p298 = scmp.lt.s32.totalorder %s23, 1
        %s299 = scalar_select %p298, %s23, 1
        %s300 = smul.addr %s299, 8
        %s301 = scalar_lea.vmem %s0, %s300
        %p302 = scmp.lt.s32.totalorder %s24, 1
        %s303 = scalar_select %p302, %s24, 1
        %s304 = scalar_lea.vmem %s2, %s303
        %p305 = scmp.lt.s32.totalorder %s24, 1
        %s306 = scalar_select %p305, %s24, 1
        %s307 = scalar_lea.vmem %s3, %s306
        %p308 = scmp.lt.s32.totalorder %s23, 1
        %s309 = scalar_select %p308, %s23, 1
        %s310 = smul.addr %s309, 8
        %s311 = scalar_lea.vmem %s4, %s310
        %p312 = scmp.lt.s32.totalorder %s23, 1
        %s313 = scalar_select %p312, %s23, 1
        %s314 = smul.addr %s313, 8
        %s315 = scalar_lea.vmem %s5, %s314
        %p316 = scmp.eq.s32.totalorder %s24, 0
        // Predicated region
        $region45: #{tpu_custom_call.1} parent=39 // pred_check
          %p317 = pneg %p316
        $region46: #{tpu_custom_call.1} parent=39 // pred_check_branch
          %319 = sbr.rel (%p317) target = $region48
        $region47: #{tpu_custom_call.1} parent=39 // pred_region
          %v320 = vld [vmem:[%s301] sm:$0xff]
          %v321 = vmul.f32 %v320, %v320
          %vm322 = vcmask 523264
          %v323 = vsel %vm322, %v321, 0.0
          %324 = vadd.xlane.f32.xlu0 %v323
          %v325 = vpop.xlane.xlu0 %324
          %v326 = vmax.f32 %v325, 1e-24
          %v327 = vrsqrt.pop %v326
          %v328 = vmul.f32 %v327, 30.0
          %vm329 = vcmask 7168
          %330 = vst.msk [vmem:[#allocation2] sm:$0xff] %vm329, %v328
          %331 = vst.msk [vmem:[#allocation3] sm:$0xff] %vm329, -1e+30
          %332 = vst.msk [vmem:[#allocation4] sm:$0xff] %vm329, 0.0
          %333 = vst.msk [vmem:[#allocation5] sm:$0xff] %vm329, 0.0
        $region48: #{tpu_custom_call.1} parent=39 // pred_fallthru
          _
        %v334 = vld [vmem:[%s301] sm:$0xff]
        %v335 = vld [vmem:[%s258] sm:$0xff]
        %v336 = vld [vmem:[%s258 + $0x8] sm:$0xff]
        %v337 = vld [vmem:[%s258 + $0x10] sm:$0xff]
        %v338 = vld [vmem:[%s258 + $0x18] sm:$0xff]
        %v339 = vld [vmem:[%s258 + $0x20] sm:$0xff]
        %v340 = vld [vmem:[%s258 + $0x28] sm:$0xff]
        %v341 = vld [vmem:[%s258 + $0x30] sm:$0xff]
        %v342 = vld [vmem:[%s258 + $0x38] sm:$0xff]
        %vm343 = vcmask 523264
        %v345 = vsel %vm343, %v334, 0
        %347 = vmatprep.subr.mxu0 0.0
        %348 = vmatpush1.msra.mxu0 %v335
        %349 = vmatprep.subr.mxu0 0.0
        %350 = vmatpush1.msra.mxu0 %v336
        %351 = vmatprep.subr.mxu0 0.0
        %352 = vmatpush1.msra.mxu0 %v337
        %353 = vmatprep.subr.mxu0 0.0
        %354 = vmatpush1.msra.mxu0 %v338
        %355 = vmatprep.subr.mxu0 0.0
        %356 = vmatpush1.msra.mxu0 %v339
        %357 = vmatprep.subr.mxu0 0.0
        %358 = vmatpush1.msra.mxu0 %v340
        %359 = vmatprep.subr.mxu0 0.0
        %360 = vmatpush1.msra.mxu0 %v341
        %361 = vmatprep.subr.mxu0 0.0
        %362 = vmatpush1.msra.mxu0 %v342
        %363 = vmatprep.subr.mxu0 0.0
        %364 = vmatpush1.msra.mxu0 0.0
        %365 = vmatprep.subr.mxu0 0.0
        %366 = vmatpush1.msra.mxu0 0.0
        %367 = vmatprep.subr.mxu0 0.0
        %368 = vmatpush1.msra.mxu0 0.0
        %369 = vmatprep.subr.mxu0 0.0
        %370 = vmatpush1.msra.mxu0 0.0
        %371 = vmatprep.subr.mxu0 0.0
        %372 = vmatpush1.msra.mxu0 0.0
        %373 = vmatprep.subr.mxu0 0.0
        %374 = vmatpush1.msra.mxu0 0.0
        %375 = vmatprep.subr.mxu0 0.0
        %376 = vmatpush1.msra.mxu0 0.0
        %377 = vmatprep.subr.mxu0 0.0
        %378 = vmatpush1.msra.mxu0 0.0
        %379 = vmatprep.subr.mxu0 0.0
        %380 = vmatpush1.msra.mxu0 0.0
        %381 = vmatprep.subr.mxu0 0.0
        %382 = vmatpush1.msra.mxu0 0.0
        %383 = vmatprep.subr.mxu0 0.0
        %384 = vmatpush1.msra.mxu0 0.0
        %385 = vmatprep.subr.mxu0 0.0
        %386 = vmatpush1.msra.mxu0 0.0
        %387 = vmatprep.subr.mxu0 0.0
        %388 = vmatpush1.msra.mxu0 0.0
        %389 = vmatprep.subr.mxu0 0.0
        %390 = vmatpush1.msra.mxu0 0.0
        %391 = vmatprep.subr.mxu0 0.0
        %392 = vmatpush1.msra.mxu0 0.0
        %393 = vmatprep.subr.mxu0 0.0
        %394 = vmatpush1.msra.mxu0 0.0
        %395 = vmatprep.subr.mxu0 0.0
        %396 = vmatpush1.msra.mxu0 0.0
        %397 = vmatprep.subr.mxu0 0.0
        %398 = vmatpush1.msra.mxu0 0.0
        %399 = vmatprep.subr.mxu0 0.0
        %400 = vmatpush1.msra.mxu0 0.0
        %401 = vmatprep.subr.mxu0 0.0
        %402 = vmatpush1.msra.mxu0 0.0
        %403 = vmatprep.subr.mxu0 0.0
        %404 = vmatpush1.msra.mxu0 0.0
        %405 = vmatprep.subr.mxu0 0.0
        %406 = vmatpush1.msra.mxu0 0.0
        %407 = vmatprep.subr.mxu0 0.0
        %408 = vmatpush1.msra.mxu0 0.0
        %409 = vmatprep.subr.mxu0 0.0
        %410 = vmatpush1.msra.mxu0 0.0
        %411 = vmatprep.mubr.f32.mxu0 0.0
        %412 = vmatmul.mubr.f32.gmra.mrb[0].mxu0 %v345
        %v413 = vpop.f32.mrb[0].mxu0
        %v414 = vadd.f32 0.0, %v413
        %v415 = vpop.f32.mrb[0].mxu0
        %416 = vdwg.mxu0
        %v417 = vld [vmem:[#allocation2] sm:$0xff]
        %419 = vset.pattern.permute.xlu0 0
        %420 = vperm.xlu0 %419, %v417
        %v421 = vpop.permute.xlu0 %420
        %v423 = vmul.f32 %v414, %v421
        %v424 = vld [vmem:[%s304] sm:$0x1]
        %v426 = vlaneseq
        %v427 = vshrl.u32 %v426, 7
        %v428 = vsub.s32 0, %v427
        %v429 = vrot.slane %v424, %v428
        %v431 = vmul.f32 %v423, %v429
        %v432 = vld [vmem:[%s311] sm:$0xff]
        %s433 = smul.u32 %s24, 128
        %v434 = vstv %s433
        %v435 = vsub.s32 %v432, %v434
        %v436 = vlaneseq
        %v437 = vand.u32 %v436, 127
        %438 = vset.pattern.permute.xlu0 0
        %439 = vperm.xlu0 %438, %v435
        %v440 = vpop.permute.xlu0 %439
        %vm441 = vcmp.eq.s32.totalorder %v437, %v440
        %v442 = vsel %vm441, 1, 0
        %v443 = vcvt.s32.f32 %v442
        %v444 = vmul.f32 %v443, 12.0
        %v445 = vsub.f32 %v431, %v444
        %v446 = vld [vmem:[%s307] sm:$0x1]
        %v448 = vlaneseq
        %v449 = vshrl.u32 %v448, 7
        %v450 = vsub.s32 0, %v449
        %v451 = vrot.slane %v446, %v450
        %v453 = vadd.f32 %v445, %v451
        %v454 = vld [vmem:[#allocation3] sm:$0xff]
        %455 = vmax.xlane.f32.xlu0 %v453
        %v456 = vpop.xlane.xlu0 %455
        %v457 = vmax.f32 %v454, %v456
        %v458 = vsub.f32 %v454, %v457
        %v459 = vmul.f32 %v458, 1.442695
        %v460 = vpow.pop %v459
        %462 = vset.pattern.permute.xlu0 0
        %463 = vperm.xlu0 %462, %v457
        %v464 = vpop.permute.xlu0 %463
        %v466 = vsub.f32 %v453, %v464
        %v467 = vmul.f32 %v466, 1.442695
        %v468 = vpow.pop %v467
        %v469 = vld [vmem:[#allocation4] sm:$0xff]
        %v470 = vmul.f32 %v460, %v469
        %471 = vadd.xlane.f32.xlu0 %v468
        %v472 = vpop.xlane.xlu0 %471
        %v473 = vadd.f32 %v470, %v472
        %vm474 = vcmask 7168
        %475 = vst.msk [vmem:[#allocation4] sm:$0xff] %vm474, %v473
        %476 = vst.msk [vmem:[#allocation3] sm:$0xff] %vm474, %v457
        %v477 = vld [vmem:[#allocation5] sm:$0xff]
        %v478 = vmul.f32 %v443, %v453
        %479 = vadd.xlane.f32.xlu0 %v478
        %v480 = vpop.xlane.xlu0 %479
        %v481 = vadd.f32 %v477, %v480
        %482 = vst.msk [vmem:[#allocation5] sm:$0xff] %vm474, %v481
        %p483 = scmp.eq.s32.totalorder %s24, 1
        // Predicated region
        $region49: #{tpu_custom_call.1} parent=39 // pred_check
          %p484 = pneg %p483
        $region50: #{tpu_custom_call.1} parent=39 // pred_check_branch
          %486 = sbr.rel (%p484) target = $region52
        $region51: #{tpu_custom_call.1} parent=39 // pred_region
          %v487 = vld [vmem:[#allocation3] sm:$0xff]
          %v488 = vld [vmem:[#allocation4] sm:$0xff]
          %v489 = vlog2.pop %v488
          %v490 = vmul.f32 %v489, 0.6931472
          %v491 = vadd.f32 %v487, %v490
          %v492 = vld [vmem:[#allocation5] sm:$0xff]
          %v493 = vsub.f32 %v491, %v492
          %494 = vst.msk [vmem:[%s315] sm:$0xff] %vm474, %v493
        $region52: #{tpu_custom_call.1} parent=39 // pred_fallthru
          _
        %p495 = scmp.lt.s32.totalorder %s23, 1
        %s496 = scalar_select %p495, %s23, 1
        %s497 = smul.addr %s496, 8
        %s498 = scalar_lea.vmem %s5, %s497
        // Predicated region
        $region53: #{tpu_custom_call.1} parent=39 // pred_check
          %p499 = pneg %p179
        $region54: #{tpu_custom_call.1} parent=39 // pred_check_branch
          %501 = sbr.rel (%p499) target = $region56
        $region55: #{tpu_custom_call.1} parent=39 // pred_region
          _
        $region56: #{tpu_custom_call.1} parent=39 // pred_fallthru
          _
      $region40: #{tpu_custom_call.1} parent=5 // pred_fallthru
        _
      %p502 = scmp.le.s32.totalorder 2, %s14
      // Predicated region
      $region57: #{tpu_custom_call.1} parent=5 // pred_check
        %p503 = pneg %p502
      $region58: #{tpu_custom_call.1} parent=5 // pred_check_branch
        %505 = sbr.rel (%p503) target = $region60
      $region59: #{tpu_custom_call.1} parent=5 // pred_region
        %s506 = ssub.s32 %s14, 2
        // Predicated region
        $region61: #{tpu_custom_call.1} parent=59 // pred_check
          %p507 = pneg %p185
        $region62: #{tpu_custom_call.1} parent=59 // pred_check_branch
          %509 = sbr.rel (%p507) target = $region64
        $region63: #{tpu_custom_call.1} parent=59 // pred_region
          %p510 = scmp.lt.s32.totalorder %s25, 1
          %s511 = scalar_select %p510, %s25, 1
          %s512 = smul.addr %s511, 8
          %s513 = scalar_lea.vmem %s5, %s512
        $region64: #{tpu_custom_call.1} parent=59 // pred_fallthru
          _
      $region60: #{tpu_custom_call.1} parent=5 // pred_fallthru
        _
    $region6: #{tpu_custom_call.1} parent=1 // loop_footer
      %s18 = sadd.s32 1, %s14
    $region7: #{tpu_custom_call.1} parent=1 // loop_footer_branch
      %13 = sbr.rel target = $region3
    $region8: #{tpu_custom_call.1} parent=1 // loop_exit
      _
    %514 = vsyncpa [#allocation7], 1
    %s515 = scalar_lea.sflag [#allocation7], 1
    %516 = vsyncpa %s515, 1

</llo_original>
